<compile_context>
chip_gen: v6e
topology: v6e:2x2x1
jax: 0.10.0
libtpu: 0.0.40
codegen_flags: <defaults>
</compile_context>

<pallas_src>
import math

import jax
import jax.numpy as jnp
from jax.experimental import pallas as pl
from jax.experimental.pallas import tpu as pltpu


def _round_up(x: int, m: int) -> int:
    return (x + m - 1) // m * m


def _drop_path_kernel(scale_ref, x_ref, out_ref):
    """scale_ref: SMEM (B,) f32; x_ref/out_ref: VMEM (1, TILE_R, LANES)."""
    b = pl.program_id(0)
    s = scale_ref[b]                       # per-sample scalar: 0 or 1/keep_prob
    out_ref[...] = (x_ref[...] * s).astype(out_ref.dtype)


_TILE_BYTES = 1 << 20   # ~1 MiB per tile (x2 buffers x in/out ~= 4 MiB VMEM)


def drop_path(x, drop_prob: float = 0.0, training: bool = False, *,
              key=None, seed: int = 0):
    """JAX/Pallas equivalent of drop_path_f (per-sample stochastic depth)."""
    if drop_prob == 0.0 or not training:
        return x

    keep_prob = 1.0 - drop_prob
    b = x.shape[0]
    n = math.prod(x.shape[1:])

    # Per-sample keep/drop scale, computed once (B scalars) in plain JAX.
    # random_tensor = floor(keep_prob + U) -> Bernoulli(keep_prob) in {0, 1}.
    if key is None:
        key = jax.random.PRNGKey(seed)
    u = jax.random.uniform(key, (b,), dtype=jnp.float32)
    mask = jnp.floor(jnp.float32(keep_prob) + u)
    scale = mask * jnp.float32(1.0 / keep_prob)            # (B,) float32

    # Pick the widest lane width that divides n (no padding copy in the common
    # case); fall back to padding up to a multiple of 128 lanes otherwise.
    lanes = 128
    for cand in (1024, 512, 256, 128):
        if n % cand == 0:
            lanes = cand
            break
    n_pad = _round_up(n, lanes)
    rows = n_pad // lanes

    itemsize = jnp.dtype(x.dtype).itemsize
    sub = max(8, 32 // max(itemsize, 1))                   # 8 f32 / 16 bf16 / 32 int8
    max_rows = max(sub, _TILE_BYTES // (lanes * 4))
    if rows <= max_rows:
        tile_rows = rows            # full second-minor dim: no 8-divisibility needed
    else:
        tile_rows = _round_up(min(max_rows, rows), sub)

    x2d = x.reshape(b, n)
    if n_pad != n:
        x2d = jnp.pad(x2d, ((0, 0), (0, n_pad - n)))       # glue pad (rare path)
    x3d = x2d.reshape(b, rows, lanes)

    grid = (b, pl.cdiv(rows, tile_rows))
    out3d = pl.pallas_call(
        _drop_path_kernel,
        out_shape=jax.ShapeDtypeStruct((b, rows, lanes), x.dtype),
        grid=grid,
        in_specs=[
            pl.BlockSpec(memory_space=pltpu.MemorySpace.SMEM),             # scale (B,)
            pl.BlockSpec((1, tile_rows, lanes), lambda i, j: (i, j, 0)),   # x tile
        ],
        out_specs=pl.BlockSpec((1, tile_rows, lanes), lambda i, j: (i, j, 0)),
        compiler_params=pltpu.CompilerParams(
            dimension_semantics=("parallel", "parallel")),
    )(scale, x3d)

    out = out3d.reshape(b, n_pad)
    if n_pad != n:
        out = out[:, :n]
    # TODO(synk): optional further win — skip the input DMA entirely for
    # dropped samples (write zeros) via scalar-prefetch-driven index maps.
    return out.reshape(x.shape)


class DropPath:
    """Drop paths (Stochastic Depth) per sample — JAX/Pallas version."""

    def __init__(self, drop_prob=None):
        self.drop_prob = drop_prob if drop_prob is not None else 0.0
        self.training = True

    def __call__(self, x, *, key=None, seed: int = 0):
        return drop_path(x, self.drop_prob, self.training, key=key, seed=seed)


if __name__ == "__main__":
    key = jax.random.PRNGKey(0)
    B, C, H, W = 2, 4, 16, 16
    x = jax.random.normal(key, (B, C, H, W), dtype=jnp.float32)

    module = DropPath(drop_prob=0.2)
    module.training = True

    # Training path: exercises the Pallas kernel.
    y = jax.block_until_ready(module(x, seed=1234))

    # Sanity: each sample's output is either all-zero or x / keep_prob.
    keep_prob = 1.0 - module.drop_prob
    for i in range(B):
        row = y[i]
        is_zero = bool(jnp.all(row == 0.0))
        is_scaled = bool(jnp.allclose(row, x[i] / keep_prob, atol=1e-6))
        assert is_zero or is_scaled, "DropPath row is neither dropped nor kept-scaled"

    # Eval path: identity.
    module.training = False
    y_eval = jax.block_until_ready(module(x))
    assert bool(jnp.array_equal(y_eval, x)), "eval-mode DropPath must be identity"

    print("KERNEL_OK")
</pallas_src>

<mosaic_0001>
module attributes {stable_mosaic.version = 11 : i64} {
  func.func @_drop_path_kernel(%arg0: i32, %arg1: i32, %arg2: memref<2xf32, #tpu.memory_space<smem>>, %arg3: memref<1x1x1024xf32, #tpu.memory_space<vmem>>, %arg4: memref<1x1x1024xf32, #tpu.memory_space<vmem>>) attributes {dimension_semantics = [#tpu.dimension_semantics<parallel>, #tpu.dimension_semantics<parallel>], iteration_bounds = array<i64: 2, 1>, scalar_prefetch = 0 : i64, scratch_operands = 0 : i64, tpu.core_type = #tpu.core_type<tc>, window_params = [{transform_indices = @transform_0, window_bounds = array<i64: 2>}, {transform_indices = @transform_1, window_bounds = array<i64: 1, 1, 1024>}, {transform_indices = @transform_2, window_bounds = array<i64: 1, 1, 1024>}]} {
    %0 = arith.index_cast %arg0 : i32 to index
    %1 = memref.load %arg2[%0] : memref<2xf32, #tpu.memory_space<smem>>
    %c0 = arith.constant 0 : index
    %c0_0 = arith.constant 0 : index
    %c0_1 = arith.constant 0 : index
    %2 = vector.load %arg3[%c0, %c0_0, %c0_1] : memref<1x1x1024xf32, #tpu.memory_space<vmem>>, vector<1x1x1024xf32>
    %3 = vector.broadcast %1 : f32 to vector<1x1x1024xf32>
    %4 = arith.mulf %2, %3 : vector<1x1x1024xf32>
    %c0_2 = arith.constant 0 : index
    %c0_3 = arith.constant 0 : index
    %c0_4 = arith.constant 0 : index
    %5 = vector.load %arg4[%c0_2, %c0_3, %c0_4] : memref<1x1x1024xf32, #tpu.memory_space<vmem>>, vector<1x1x1024xf32>
    tpu.vector_store %arg4[%c0_2, %c0_3, %c0_4], %4 {strides = array<i32>} : memref<1x1x1024xf32, #tpu.memory_space<vmem>>, vector<1x1x1024xf32>,
    return
  }
  func.func @transform_0(%arg0: i32, %arg1: i32) -> i32 {
    %c0_i32 = arith.constant 0 : i32
    %c0_i32_0 = arith.constant 0 : i32
    return %c0_i32 : i32
  }
  func.func @transform_1(%arg0: i32, %arg1: i32) -> (i32, i32, i32) {
    %c0_i32 = arith.constant 0 : i32
    %c0_i32_0 = arith.constant 0 : i32
    return %arg0, %arg1, %c0_i32 : i32, i32, i32
  }
  func.func @transform_2(%arg0: i32, %arg1: i32) -> (i32, i32, i32) {
    %c0_i32 = arith.constant 0 : i32
    %c0_i32_0 = arith.constant 0 : i32
    return %arg0, %arg1, %c0_i32 : i32, i32, i32
  }
}

</mosaic_0001>

<llo_original>
// kernel: tpu_custom_call.1
$region0: #{tpu_custom_call.1}
  #allocation0 [shape = 'u32[]', space=smem, size = 0x4, offset = 0x4, fixed_abs, tag = 'smem constant byte address 0x4 - core index']
  #allocation1 [shape = 'u32[144,128]{1,0:T(1,128)}', space=vmem, size = 0x12000, scoped, tag = 'internal scratch']
  %s0 = inlined_call_operand.hbm [shape: f32[2], index: 0, kind: input, shape index: {}]
  %s1 = inlined_call_operand.hbm [shape: f32[2,1,1024], index: 1, kind: input, shape index: {}]
  %s2 = inlined_call_operand.hbm [shape: f32[2,1,1024], index: 2, kind: output, shape index: {}]
  %s3 = sld [smem:[#allocation0]]
  $region49: #{tpu_custom_call.1} parent=0
    _
  %s5 = ssub.s32 1, %s3
  %s6 = scalar_select 0, %s5, %s3
  $region1: #{tpu_custom_call.1} parent=0
    #allocation2 [shape = 'u8[512]{0}', space=smem, size = 0x200, scoped, tag = 'input window, operand 0, single buffered']
    #allocation3 [shape = 's32[2]{0}', space=sflag, size = 0x8, scoped, tag = 'scoped memory for tpu_custom_call.1']
    #allocation4 [shape = 's32[2]{0}', space=sflag, size = 0x8, scoped, tag = 'scoped memory for tpu_custom_call.1']
    #allocation5 [shape = 's32[2]{0}', space=sflag, size = 0x8, scoped, tag = 'scoped memory for tpu_custom_call.1']
    #allocation6 [shape = 'u8[8192]{0}', space=vmem, size = 0x2000, scoped, tag = 'input window, operand 1']
    #allocation7 [shape = 'u8[8192]{0}', space=vmem, size = 0x2000, scoped, tag = 'output window, operand 0']
    %7 = vsyncpa [#allocation5], 0
    %8 = vsyncpa [#allocation3], 0
    %s9 = scalar_lea.sflag [#allocation3], 1
    %10 = vsyncpa %s9, 0
    %11 = vsyncpa [#allocation4], 0
    %s12 = scalar_lea.sflag [#allocation4], 1
    %13 = vsyncpa %s12, 0
    loop: start=0, step=1, limit=4
    $region2: #{tpu_custom_call.1} parent=1 // loop_pre_header
      _
    $region3: #{tpu_custom_call.1} parent=1 // loop_header
      %s15 = sphi 0, %s19
      %p16 = scmp.ge.s32.totalorder %s15, 4
      %s22 = sphi 0, %s34
      %s23 = sphi 0, %s30
      %s24 = sphi 0, %s22
      %s25 = sphi 0, %s23
      %s26 = sphi 0, %s24
      %s27 = sphi 0, %s25
      %s35 = sphi 0, %s35
      %s37 = sphi 0, %s35
      %s38 = sphi 0, %s37
      %s52 = sphi 0, %s38
      %s60 = sphi 0, %s62
      %s63 = sphi 0, %s60
      %s64 = sphi 0, %s63
      %s80 = sphi 0, %s64
      %s88 = sphi 0, %s90
      %s91 = sphi 0, %s88
      %s92 = sphi 0, %s91
      %s108 = sphi 0, %s92
    $region4: #{tpu_custom_call.1} parent=1 // loop_header_branch
      %18 = sbr.rel (%p16) target = $region8
    $region5: #{tpu_custom_call.1} parent=1 // loop_body
      %s20 = ssub.s32 %s15, 1
      %s21 = ssub.s32 %s15, 2
      %s28 = sadd.s32 1, %s23
      %p29 = scmp.ge.s32.totalorder %s28, 1
      %s30 = scalar_select %p29, 0, %s28
      %s31 = sadd.s32 1, %s22
      %s32 = scalar_select %p29, %s31, %s22
      %p33 = scmp.ge.s32.totalorder %s32, 2
      %s34 = scalar_select %p33, 0, %s32
      %s36 = sadd.s32 %s35, 1
      %p39 = scmp.eq.s32.totalorder %s15, 1
      %p40 = scmp.ne.s32.totalorder %s35, %s37
      %p41 = scmp.eq.s32.totalorder %s15, 0
      %p42 = por %p40, %p41
      %p43 = scmp.ne.s32.totalorder %s35, %s37
      %p44 = scmp.eq.s32.totalorder %s20, 1
      %p45 = por %p43, %p44
      %p46 = scmp.ne.s32.totalorder %s37, %s38
      %p47 = scmp.eq.s32.totalorder %s20, 0
      %p48 = por %p46, %p47
      %p49 = scmp.ne.s32.totalorder %s37, %s38
      %p50 = scmp.eq.s32.totalorder %s21, 1
      %p51 = por %p49, %p50
      %p53 = scmp.ne.s32.totalorder %s38, %s52
      %p54 = scmp.eq.s32.totalorder %s21, 0
      %p55 = por %p53, %p54
      %s56 = ssub.s32 %s22, %s34
      %s57 = ssub.s32 %s23, %s30
      %s58 = sor.u32 %s56, %s57
      %p59 = scmp.eq.s32.totalorder %s58, 0
      %s61 = sadd.s32 %s60, 1
      %s62 = scalar_select %p59, %s60, %s61
      %p65 = pneg %p59
      %p66 = scmp.eq.s32.totalorder %s15, 1
      %p67 = por %p65, %p66
      %p68 = scmp.ne.s32.totalorder %s60, %s63
      %p69 = scmp.eq.s32.totalorder %s15, 0
      %p70 = por %p68, %p69
      %p71 = scmp.ne.s32.totalorder %s60, %s63
      %p72 = scmp.eq.s32.totalorder %s20, 1
      %p73 = por %p71, %p72
      %p74 = scmp.ne.s32.totalorder %s63, %s64
      %p75 = scmp.eq.s32.totalorder %s20, 0
      %p76 = por %p74, %p75
      %p77 = scmp.ne.s32.totalorder %s63, %s64
      %p78 = scmp.eq.s32.totalorder %s21, 1
      %p79 = por %p77, %p78
      %p81 = scmp.ne.s32.totalorder %s64, %s80
      %p82 = scmp.eq.s32.totalorder %s21, 0
      %p83 = por %p81, %p82
      %s84 = ssub.s32 %s22, %s34
      %s85 = ssub.s32 %s23, %s30
      %s86 = sor.u32 %s84, %s85
      %p87 = scmp.eq.s32.totalorder %s86, 0
      %s89 = sadd.s32 %s88, 1
      %s90 = scalar_select %p87, %s88, %s89
      %p93 = pneg %p87
      %p94 = scmp.eq.s32.totalorder %s15, 1
      %p95 = por %p93, %p94
      %p96 = scmp.ne.s32.totalorder %s88, %s91
      %p97 = scmp.eq.s32.totalorder %s15, 0
      %p98 = por %p96, %p97
      %p99 = scmp.ne.s32.totalorder %s88, %s91
      %p100 = scmp.eq.s32.totalorder %s20, 1
      %p101 = por %p99, %p100
      %p102 = scmp.ne.s32.totalorder %s91, %s92
      %p103 = scmp.eq.s32.totalorder %s20, 0
      %p104 = por %p102, %p103
      %p105 = scmp.ne.s32.totalorder %s91, %s92
      %p106 = scmp.eq.s32.totalorder %s21, 1
      %p107 = por %p105, %p106
      %p109 = scmp.ne.s32.totalorder %s92, %s108
      %p110 = scmp.eq.s32.totalorder %s21, 0
      %p111 = por %p109, %p110
      %p112 = scmp.le.s32.totalorder 1, %s15
      %p113 = scmp.lt.s32.totalorder %s15, 3
      %p114 = pnand %p112, %p113
      %p115 = pneg %p114
      // Predicated region
      $region9: #{tpu_custom_call.1} parent=5 // pred_check
        _
      $region10: #{tpu_custom_call.1} parent=5 // pred_check_branch
        %117 = sbr.rel (%p114) target = $region12
      $region11: #{tpu_custom_call.1} parent=5 // pred_region
        %s118 = ssub.s32 %s15, 1
        // Predicated region
        $region13: #{tpu_custom_call.1} parent=11 // pred_check
          %p119 = pneg %p48
        $region14: #{tpu_custom_call.1} parent=11 // pred_check_branch
          %121 = sbr.rel (%p119) target = $region16
        $region15: #{tpu_custom_call.1} parent=11 // pred_region
          %s123 = ssub.s32 16, 16
          %124 = vsyncadd [#allocation5], %s123
          %127 = dma.hbm_to_smem %s0, 16, [#allocation2], [#allocation5]
        $region16: #{tpu_custom_call.1} parent=11 // pred_fallthru
          _
      $region12: #{tpu_custom_call.1} parent=5 // pred_fallthru
        _
      %p128 = scmp.lt.s32.totalorder %s15, 2
      // Predicated region
      $region17: #{tpu_custom_call.1} parent=5 // pred_check
        %p129 = pneg %p128
      $region18: #{tpu_custom_call.1} parent=5 // pred_check_branch
        %131 = sbr.rel (%p129) target = $region20
      $region19: #{tpu_custom_call.1} parent=5 // pred_region
        // Predicated region
        $region21: #{tpu_custom_call.1} parent=19 // pred_check
          %p132 = pneg %p70
        $region22: #{tpu_custom_call.1} parent=19 // pred_check_branch
          %134 = sbr.rel (%p132) target = $region24
        $region23: #{tpu_custom_call.1} parent=19 // pred_region
          %s135 = sand.u32 %s60, 1
          %s136 = scalar_lea.sflag [#allocation3], %s135
          %s137 = sand.u32 %s60, 1
          %s138 = smul.addr %s137, 8
          %s139 = scalar_lea.vmem [#allocation6], %s138
          %s141 = ssub.s32 128, 128
          %142 = vsyncadd %s136, %s141
          %s143 = smul.addr %s23, 8
          %s144 = smul.addr %s22, 8
          %s145 = sadd.s32 %s143, %s144
          %s146 = smul.addr %s145, 16
          %s147 = scalar_lea.hbm %s1, %s146
          %s149 = sshll.u32 %s139, 4
          %s150 = int_to_ptr.vmem [resolvable:$true] %s149
          %152 = dma.hbm_to_vmem [thread:$0]  %s147, 128, %s150, %s136
        $region24: #{tpu_custom_call.1} parent=19 // pred_fallthru
          _
      $region20: #{tpu_custom_call.1} parent=5 // pred_fallthru
        _
      %p153 = scmp.le.s32.totalorder 1, %s15
      %p154 = scmp.lt.s32.totalorder %s15, 3
      %p155 = pnand %p153, %p154
      %p156 = pneg %p155
      // Predicated region
      $region25: #{tpu_custom_call.1} parent=5 // pred_check
        _
      $region26: #{tpu_custom_call.1} parent=5 // pred_check_branch
        %158 = sbr.rel (%p155) target = $region28
      $region27: #{tpu_custom_call.1} parent=5 // pred_region
        %s159 = ssub.s32 %s15, 1
        // Predicated region
        $region29: #{tpu_custom_call.1} parent=27 // pred_check
          %p160 = pneg %p48
        $region30: #{tpu_custom_call.1} parent=27 // pred_check_branch
          %162 = sbr.rel (%p160) target = $region32
        $region31: #{tpu_custom_call.1} parent=27 // pred_region
          %163 = dma.done [#allocation5], 16
        $region32: #{tpu_custom_call.1} parent=27 // pred_fallthru
          _
        %s164 = sand.u32 %s63, 1
        %s165 = scalar_lea.sflag [#allocation3], %s164
        %s166 = sand.u32 %s63, 1
        %s167 = smul.addr %s166, 8
        %s168 = scalar_lea.vmem [#allocation6], %s167
        // Predicated region
        $region33: #{tpu_custom_call.1} parent=27 // pred_check
          %p169 = pneg %p76
        $region34: #{tpu_custom_call.1} parent=27 // pred_check_branch
          %171 = sbr.rel (%p169) target = $region36
        $region35: #{tpu_custom_call.1} parent=27 // pred_region
          %172 = dma.done %s165, 128
        $region36: #{tpu_custom_call.1} parent=27 // pred_fallthru
          _
        %173 = sfence
        %p174 = pneg %p48
        %p175 = pneg %p45
        %s176 = sand.u32 %s63, 1
        %s177 = scalar_lea.sflag [#allocation3], %s176
        %s178 = sand.u32 %s63, 1
        %s179 = smul.addr %s178, 8
        %s180 = scalar_lea.vmem [#allocation6], %s179
        %p181 = pneg %p76
        %p182 = pneg %p73
        %p183 = pneg %p104
        %p184 = pneg %p101
        %s185 = sand.u32 %s91, 1
        %s186 = scalar_lea.sflag [#allocation4], %s185
        %s187 = sand.u32 %s91, 1
        %s188 = smul.addr %s187, 8
        %s189 = scalar_lea.vmem [#allocation7], %s188
        %s190 = sld [smem:[#allocation2 + %s24]]
        %v191 = vld [vmem:[%s168] sm:$0xff]
        %v192 = vstv %s190
        %v193 = vmul.f32 %v191, %v192
        %194 = vst [vmem:[%s189] sm:$0xff] %v193
        %s195 = sand.u32 %s91, 1
        %s196 = scalar_lea.sflag [#allocation4], %s195
        %s197 = sand.u32 %s91, 1
        %s198 = smul.addr %s197, 8
        %s199 = scalar_lea.vmem [#allocation7], %s198
        // Predicated region
        $region37: #{tpu_custom_call.1} parent=27 // pred_check
          %p200 = pneg %p101
        $region38: #{tpu_custom_call.1} parent=27 // pred_check_branch
          %202 = sbr.rel (%p200) target = $region40
        $region39: #{tpu_custom_call.1} parent=27 // pred_region
          %s204 = ssub.s32 128, 128
          %205 = vsyncadd %s196, %s204
          %s206 = smul.addr %s25, 8
          %s207 = smul.addr %s24, 8
          %s208 = sadd.s32 %s206, %s207
          %s209 = smul.addr %s208, 16
          %s210 = scalar_lea.hbm %s2, %s209
          %s212 = sshll.u32 %s199, 4
          %s213 = int_to_ptr.vmem [resolvable:$true] %s212
          %215 = dma.vmem_to_hbm [thread:$0]  %s213, 128, %s210, %s196
        $region40: #{tpu_custom_call.1} parent=27 // pred_fallthru
          _
      $region28: #{tpu_custom_call.1} parent=5 // pred_fallthru
        _
      %p216 = scmp.le.s32.totalorder 2, %s15
      // Predicated region
      $region41: #{tpu_custom_call.1} parent=5 // pred_check
        %p217 = pneg %p216
      $region42: #{tpu_custom_call.1} parent=5 // pred_check_branch
        %219 = sbr.rel (%p217) target = $region44
      $region43: #{tpu_custom_call.1} parent=5 // pred_region
        %s220 = ssub.s32 %s15, 2
        // Predicated region
        $region45: #{tpu_custom_call.1} parent=43 // pred_check
          %p221 = pneg %p107
        $region46: #{tpu_custom_call.1} parent=43 // pred_check_branch
          %223 = sbr.rel (%p221) target = $region48
        $region47: #{tpu_custom_call.1} parent=43 // pred_region
          %s224 = sand.u32 %s92, 1
          %s225 = scalar_lea.sflag [#allocation4], %s224
          %s226 = sand.u32 %s92, 1
          %s227 = smul.addr %s226, 8
          %s228 = scalar_lea.vmem [#allocation7], %s227
          %229 = dma.done %s225, 128
        $region48: #{tpu_custom_call.1} parent=43 // pred_fallthru
          _
      $region44: #{tpu_custom_call.1} parent=5 // pred_fallthru
        _
    $region6: #{tpu_custom_call.1} parent=1 // loop_footer
      %s19 = sadd.s32 1, %s15
    $region7: #{tpu_custom_call.1} parent=1 // loop_footer_branch
      %14 = sbr.rel target = $region3
    $region8: #{tpu_custom_call.1} parent=1 // loop_exit
      _
    %230 = vsyncpa [#allocation3], 1
    %s231 = scalar_lea.sflag [#allocation3], 1
    %232 = vsyncpa %s231, 1
    %233 = vsyncpa [#allocation4], 1
    %s234 = scalar_lea.sflag [#allocation4], 1
    %235 = vsyncpa %s234, 1
    %236 = vsyncpa [#allocation5], 1
    %s237 = scalar_lea.sflag [#allocation5], 1
    %238 = vsyncpa %s237, 1

</llo_original>
